<compile_context>
chip_gen: v6e
topology: v6e:2x2x1
jax: 0.10.0
libtpu: 0.0.40
codegen_flags: <defaults>
</compile_context>

<pallas_src>
import numpy as np
import jax
import jax.numpy as jnp
from jax.experimental import pallas as pl
from jax.experimental.pallas import tpu as pltpu


def _round_up(n, m):
    return ((n + m - 1) // m) * m


# ---------------------------------------------------------------------------
# Kernel: one f32 MXU matmul on the transposed problem.
#   y^T_tile = W_T @ x^T_tile + b     (bias broadcasts along the lane axis)
# ---------------------------------------------------------------------------
def _flinear_kernel(w_ref, x_ref, b_ref, y_ref):
    """w_ref: (N2P, K2P) f32   -- [[Wr, -Wi], [Wi, Wr]] (zero padded)
    x_ref: (K2P, TM)  f32   -- [xr^T ; xi^T]  (M on lanes, dense)
    b_ref: (N2P, 1)   f32   -- [br ; bi]
    y_ref: (N2P, TM)  f32   -- [yr^T ; yi^T]
    """
    acc = jnp.dot(w_ref[...], x_ref[...], preferred_element_type=jnp.float32)
    y_ref[...] = acc + b_ref[...]          # (N2P, 1) broadcasts over lanes


def _choose_tm(m_pad, k2p, n2p):
    """Lane-tile size for the M axis.

    Big tiles (up to 2048 rows) amortize the ~0.35 us per-grid-step overhead;
    we keep >= 2 grid steps when M allows so v7x's two TensorCores both get
    work ("parallel" axis), and guard the double-buffered x/y tile VMEM so
    the plan also fits v5e's 16 MiB scoped default.
    """
    if m_pad <= 128:
        return 128
    n_tiles = max(2, pl.cdiv(m_pad, 2048))
    tm = _round_up(pl.cdiv(m_pad, n_tiles), 128)
    bytes_per_col = (k2p + n2p) * 4 * 2            # x + y f32 tiles, 2 buffers
    max_tm = max(128, ((12 << 20) // bytes_per_col) // 128 * 128)
    return min(tm, max_tm)


def _complex_linear_pallas(x_t, w_t, b_col):
    """x_t: (K2P, M) f32; w_t: (N2P, K2P) f32; b_col: (N2P, 1) f32.
    Returns (N2P, M) f32 = w_t @ x_t + b_col."""
    k2p, m = x_t.shape
    n2p = w_t.shape[0]

    m_pad = _round_up(max(m, 1), 128)
    tm = _choose_tm(m_pad, k2p, n2p)
    m_pad = _round_up(m_pad, tm)
    if m_pad > m:
        x_t = jnp.pad(x_t, ((0, 0), (0, m_pad - m)))

    grid = (m_pad // tm,)

    cost = pl.CostEstimate(
        flops=2 * n2p * k2p * m_pad,
        transcendentals=0,
        bytes_accessed=(k2p * m_pad * 4            # x (f32)
                        + n2p * k2p * 4            # W (f32)
                        + n2p * 4                  # bias (f32)
                        + n2p * m_pad * 4),        # y (f32)
    )

    # Explicit scoped-VMEM budget: resident weight/bias + double-buffered
    # x/y tiles, with headroom; capped well under v7x's 64 MiB physical VMEM.
    vmem_need = 2 * (n2p * k2p + n2p) * 4 + 2 * (k2p + n2p) * tm * 4
    vmem_limit = int(min(max(2 * vmem_need, 16 << 20), 48 << 20))

    y_t = pl.pallas_call(
        _flinear_kernel,
        out_shape=jax.ShapeDtypeStruct((n2p, m_pad), jnp.float32),
        grid=grid,
        in_specs=[
            pl.BlockSpec((n2p, k2p), lambda i: (0, 0)),   # weights resident
            pl.BlockSpec((k2p, tm), lambda i: (0, i)),    # activation tiles
            pl.BlockSpec((n2p, 1), lambda i: (0, 0)),     # bias resident
        ],
        out_specs=pl.BlockSpec((n2p, tm), lambda i: (0, i)),   # lane-dense
        compiler_params=pltpu.CompilerParams(
            dimension_semantics=("parallel",),            # 2 TCs on v7x
            vmem_limit_bytes=vmem_limit),
        cost_estimate=cost,
    )(w_t, x_t, b_col)
    return y_t[:, :m]


def pack_flinear_params(w_real, w_imag, b_real, b_imag):
    """Build the complex-as-real block weight/bias ONCE (hoisted out of the
    per-call hot path, i.e. done at module init).

    Returns:
      w_t  : (N2P, K2P) f32 = [[Wr, -Wi], [Wi, Wr]], zero-padded to 8-multiples
      b_col: (N2P, 1)   f32 = [br ; bi], zero-padded
    """
    f_out, f_in = w_real.shape
    k2, n2 = 2 * f_in, 2 * f_out
    k2p, n2p = _round_up(k2, 8), _round_up(n2, 8)
    wr = w_real.astype(jnp.float32)
    wi = w_imag.astype(jnp.float32)
    w_t = jnp.concatenate(
        [jnp.concatenate([wr, -wi], axis=1),
         jnp.concatenate([wi, wr], axis=1)],
        axis=0)                                           # (2*F_out, 2*F_in)
    w_t = jnp.pad(w_t, ((0, n2p - n2), (0, k2p - k2)))
    b_col = jnp.concatenate([b_real, b_imag]).astype(jnp.float32).reshape(n2, 1)
    b_col = jnp.pad(b_col, ((0, n2p - n2), (0, 0)))
    return w_t, b_col


def flinear_forward(x, w_t, b_col, f_out):
    """Pallas-backed FLinear forward.

    x: real float32 array [..., inp]; (w_t, b_col) from pack_flinear_params.
    Returns real float32 array [..., 2*(f_out-1)] (torch.fft.irfft default n).
    """
    # TODO(synk): rfft/irfft have no Pallas equivalent; they stay in plain JAX.
    xf = jnp.fft.rfft(x.astype(jnp.float32), axis=-1)     # complex64 [..., F_in]

    lead = x.shape[:-1]
    f_in = xf.shape[-1]
    m = int(np.prod(lead)) if lead else 1
    k2p = w_t.shape[1]

    # Transposed packing: (2*F_in, M) with M on the lane axis (layout plumbing
    # in the wrapper so the kernel's loads/stores are dense and unmasked).
    xr = jnp.real(xf).reshape(m, f_in)
    xi = jnp.imag(xf).reshape(m, f_in)
    x_t = jnp.concatenate([xr, xi], axis=-1).T            # (2*F_in, M)
    x_t = jnp.pad(x_t, ((0, k2p - 2 * f_in), (0, 0)))     # sublane pad

    y_t = _complex_linear_pallas(x_t, w_t, b_col)         # (N2P, M) f32
    yr = y_t[:f_out, :]
    yi = y_t[f_out:2 * f_out, :]
    yf = (yr + 1j * yi).T.astype(jnp.complex64).reshape(*lead, f_out)
    # torch.fft.irfft default: n = 2 * (last_dim - 1)
    return jnp.fft.irfft(yf, axis=-1).astype(jnp.float32)


def _reference_forward(x, w_real, w_imag, b_real, b_imag):
    """Pure-JAX f32 reference of the same math for a sanity check."""
    xf = jnp.fft.rfft(x.astype(jnp.float32), axis=-1)
    w = (w_real + 1j * w_imag).astype(jnp.complex64)
    b = (b_real + 1j * b_imag).astype(jnp.complex64)
    yf = jnp.einsum("...i,oi->...o", xf, w) + b
    return jnp.fft.irfft(yf, axis=-1).astype(jnp.float32)


if __name__ == "__main__":
    # Module config: FLinear(inp=16, out=16) -> inp_size = out_size = 9
    inp, out = 16, 16
    inp_size = inp // 2 + 1
    out_size = out // 2 + 1

    key = jax.random.PRNGKey(0)
    kx, kwr, kwi, kbr, kbi = jax.random.split(key, 5)

    # batch=2, channels=4, spatial=16, seq=inp  ->  M = 128 kernel rows
    x = jax.random.normal(kx, (2, 4, 16, inp), dtype=jnp.float32)

    # Deterministic complex weights/bias (shapes from FLinear.__init__)
    bound = 1.0 / np.sqrt(inp_size)
    w_real = jax.random.uniform(kwr, (out_size, inp_size), jnp.float32, -bound, bound)
    w_imag = jax.random.uniform(kwi, (out_size, inp_size), jnp.float32, -bound, bound)
    b_real = jax.random.uniform(kbr, (out_size,), jnp.float32, -bound, bound)
    b_imag = jax.random.uniform(kbi, (out_size,), jnp.float32, -bound, bound)

    # Hoisted weight packing (one-time, per review feedback).
    w_t, b_col = pack_flinear_params(w_real, w_imag, b_real, b_imag)

    y = flinear_forward(x, w_t, b_col, out_size)
    y = jax.block_until_ready(y)

    y_ref = _reference_forward(x, w_real, w_imag, b_real, b_imag)
    # Tolerance covers possible reduced-precision MXU passes for f32 matmul.
    np.testing.assert_allclose(np.asarray(y), np.asarray(y_ref),
                               rtol=3e-2, atol=3e-2)

    assert y.shape == (2, 4, 16, 2 * (out_size - 1))
    print("KERNEL_OK")
</pallas_src>

<mosaic_0001>
module attributes {stable_mosaic.version = 11 : i64} {
  func.func @_flinear_kernel(%arg0: i32, %arg1: memref<24x24xf32, #tpu.memory_space<vmem>>, %arg2: memref<24x128xf32, #tpu.memory_space<vmem>>, %arg3: memref<24x1xf32, #tpu.memory_space<vmem>>, %arg4: memref<24x128xf32, #tpu.memory_space<vmem>>) attributes {dimension_semantics = [#tpu.dimension_semantics<parallel>], iteration_bounds = array<i64: 1>, scalar_prefetch = 0 : i64, scratch_operands = 0 : i64, tpu.core_type = #tpu.core_type<tc>, window_params = [{pipeline_mode = #tpu.pipeline_mode<synchronous>, transform_indices = @transform_0, window_bounds = array<i64: 24, 24>}, {transform_indices = @transform_1, window_bounds = array<i64: 24, 128>}, {pipeline_mode = #tpu.pipeline_mode<synchronous>, transform_indices = @transform_2, window_bounds = array<i64: 24, 1>}, {transform_indices = @transform_3, window_bounds = array<i64: 24, 128>}]} {
    %c0 = arith.constant 0 : index
    %c0_0 = arith.constant 0 : index
    %0 = vector.load %arg1[%c0, %c0_0] : memref<24x24xf32, #tpu.memory_space<vmem>>, vector<24x24xf32>
    %c0_1 = arith.constant 0 : index
    %c0_2 = arith.constant 0 : index
    %1 = vector.load %arg2[%c0_1, %c0_2] : memref<24x128xf32, #tpu.memory_space<vmem>>, vector<24x128xf32>
    %cst = arith.constant dense<0.000000e+00> : vector<24x128xf32>
    %2 = tpu.matmul %0, %1, %cst {dimension_numbers = #tpu.dot_dimension_numbers<[1], [0], [0], [1], [0, 0, 1, 1], [], []>} : vector<24x24xf32>, vector<24x128xf32>, vector<24x128xf32> -> vector<24x128xf32>
    %c0_3 = arith.constant 0 : index
    %c0_4 = arith.constant 0 : index
    %3 = vector.load %arg3[%c0_3, %c0_4] : memref<24x1xf32, #tpu.memory_space<vmem>>, vector<24x1xf32>
    %4 = vector.broadcast %3 : vector<24x1xf32> to vector<24x128xf32>
    %5 = arith.addf %2, %4 : vector<24x128xf32>
    %c0_5 = arith.constant 0 : index
    %c0_6 = arith.constant 0 : index
    %6 = vector.load %arg4[%c0_5, %c0_6] : memref<24x128xf32, #tpu.memory_space<vmem>>, vector<24x128xf32>
    tpu.vector_store %arg4[%c0_5, %c0_6], %5 {strides = array<i32>} : memref<24x128xf32, #tpu.memory_space<vmem>>, vector<24x128xf32>,
    return
  }
  func.func @transform_0(%arg0: i32) -> (i32, i32) {
    %c0_i32 = arith.constant 0 : i32
    %c0_i32_0 = arith.constant 0 : i32
    %c0_i32_1 = arith.constant 0 : i32
    return %c0_i32, %c0_i32_0 : i32, i32
  }
  func.func @transform_1(%arg0: i32) -> (i32, i32) {
    %c0_i32 = arith.constant 0 : i32
    %c0_i32_0 = arith.constant 0 : i32
    return %c0_i32, %arg0 : i32, i32
  }
  func.func @transform_2(%arg0: i32) -> (i32, i32) {
    %c0_i32 = arith.constant 0 : i32
    %c0_i32_0 = arith.constant 0 : i32
    %c0_i32_1 = arith.constant 0 : i32
    return %c0_i32, %c0_i32_0 : i32, i32
  }
  func.func @transform_3(%arg0: i32) -> (i32, i32) {
    %c0_i32 = arith.constant 0 : i32
    %c0_i32_0 = arith.constant 0 : i32
    return %c0_i32, %arg0 : i32, i32
  }
}

</mosaic_0001>

<llo_original>
// kernel: tpu_custom_call.1
$region0: #{tpu_custom_call.1}
  #allocation0 [shape = 'u32[]', space=smem, size = 0x4, offset = 0x4, fixed_abs, tag = 'smem constant byte address 0x4 - core index']
  #allocation1 [shape = 'u32[144,128]{1,0:T(1,128)}', space=vmem, size = 0x12000, scoped, tag = 'internal scratch']
  %s0 = inlined_call_operand.vmem [shape: f32[24,24], index: 0, kind: input, shape index: {}]
  %s1 = inlined_call_operand.hbm [shape: f32[24,128], index: 1, kind: input, shape index: {}]
  %s2 = inlined_call_operand.vmem [shape: f32[24,1], index: 2, kind: input, shape index: {}]
  %s3 = inlined_call_operand.hbm [shape: f32[24,128], index: 3, kind: output, shape index: {}]
  %s4 = sld [smem:[#allocation0]]
  $region26: #{tpu_custom_call.1} parent=0
    _
  %s6 = ssub.s32 1, %s4
  %s7 = scalar_select 0, %s6, %s4
  $region1: #{tpu_custom_call.1} parent=0
    #allocation2 [shape = 'u8[12288]{0}', space=vmem, size = 0x3000, scoped, tag = 'input window, operand 1, single buffered']
    #allocation3 [shape = 's32[1]{0}', space=sflag, size = 0x4, scoped, tag = 'scoped memory for tpu_custom_call.1']
    #allocation4 [shape = 's32[1]{0}', space=sflag, size = 0x4, scoped, tag = 'scoped memory for tpu_custom_call.1']
    #allocation5 [shape = 'u8[12288]{0}', space=vmem, size = 0x3000, scoped, tag = 'output window, operand 0, single buffered']
    %8 = vsyncpa [#allocation3], 0
    %9 = vsyncpa [#allocation4], 0
    // Predicated region
    $region2: #{tpu_custom_call.1} parent=1 // pred_check
      _
    $region3: #{tpu_custom_call.1} parent=1 // pred_check_branch
      %11 = sbr.rel (0) target = $region5
    $region4: #{tpu_custom_call.1} parent=1 // pred_region
      _
    $region5: #{tpu_custom_call.1} parent=1 // pred_fallthru
      _
    // Predicated region
    $region6: #{tpu_custom_call.1} parent=1 // pred_check
      _
    $region7: #{tpu_custom_call.1} parent=1 // pred_check_branch
      %13 = sbr.rel (0) target = $region9
    $region8: #{tpu_custom_call.1} parent=1 // pred_region
      %s15 = ssub.s32 384, 384
      %16 = vsyncadd [#allocation3], %s15
      %s17 = sshll.u32 [#allocation2], 4
      %s18 = int_to_ptr.vmem [resolvable:$true] %s17
      %23 = dma.hbm_to_vmem [thread:$0]  %s1, 384, %s18, [#allocation3], 128, 128, 8
    $region9: #{tpu_custom_call.1} parent=1 // pred_fallthru
      _
    // Predicated region
    $region10: #{tpu_custom_call.1} parent=1 // pred_check
      _
    $region11: #{tpu_custom_call.1} parent=1 // pred_check_branch
      %25 = sbr.rel (0) target = $region13
    $region12: #{tpu_custom_call.1} parent=1 // pred_region
      _
    $region13: #{tpu_custom_call.1} parent=1 // pred_fallthru
      _
    // Predicated region
    $region14: #{tpu_custom_call.1} parent=1 // pred_check
      _
    $region15: #{tpu_custom_call.1} parent=1 // pred_check_branch
      %27 = sbr.rel (0) target = $region17
    $region16: #{tpu_custom_call.1} parent=1 // pred_region
      %28 = dma.done [#allocation3], 384
    $region17: #{tpu_custom_call.1} parent=1 // pred_fallthru
      _
    %v29 = vld [vmem:[%s0] sm:$0xff]
    %v30 = vld [vmem:[%s0 + $0x8] sm:$0xff]
    %v31 = vld [vmem:[%s0 + $0x10] sm:$0xff]
    %v32 = vld [vmem:[#allocation2] sm:$0xff]
    %v33 = vld [vmem:[#allocation2 + $0x8] sm:$0xff]
    %v34 = vld [vmem:[#allocation2 + $0x10] sm:$0xff]
    %v35 = vld [vmem:[%s2] sm:$0xff]
    %v36 = vld [vmem:[%s2 + $0x8] sm:$0xff]
    %v37 = vld [vmem:[%s2 + $0x10] sm:$0xff]
    %39 = vset.pattern.permute.xlu0 0
    %40 = vperm.xlu0 %39, %v35
    %v41 = vpop.permute.xlu0 %40
    %44 = vset.pattern.permute.xlu0 0
    %45 = vperm.xlu0 %44, %v36
    %v46 = vpop.permute.xlu0 %45
    %49 = vset.pattern.permute.xlu0 0
    %50 = vperm.xlu0 %49, %v37
    %v51 = vpop.permute.xlu0 %50
    %vm53 = vcmask 195584
    %v55 = vsel %vm53, %v29, 0
    %v58 = vsel %vm53, %v30, 0
    %v61 = vsel %vm53, %v31, 0
    %63 = vmatprep.subr.mxu0 0.0
    %64 = vmatpush1.msra.mxu0 0.0
    %65 = vmatprep.subr.mxu0 0.0
    %66 = vmatpush1.msra.mxu0 0.0
    %67 = vmatprep.subr.mxu0 0.0
    %68 = vmatpush1.msra.mxu0 0.0
    %69 = vmatprep.subr.mxu0 0.0
    %70 = vmatpush1.msra.mxu0 0.0
    %71 = vmatprep.subr.mxu0 0.0
    %72 = vmatpush1.msra.mxu0 0.0
    %73 = vmatprep.subr.mxu0 0.0
    %74 = vmatpush1.msra.mxu0 0.0
    %75 = vmatprep.subr.mxu0 0.0
    %76 = vmatpush1.msra.mxu0 0.0
    %77 = vmatprep.subr.mxu0 0.0
    %78 = vmatpush1.msra.mxu0 0.0
    %79 = vmatprep.subr.mxu0 0.0
    %80 = vmatpush1.msra.mxu0 0.0
    %81 = vmatprep.subr.mxu0 0.0
    %82 = vmatpush1.msra.mxu0 0.0
    %83 = vmatprep.subr.mxu0 0.0
    %84 = vmatpush1.msra.mxu0 0.0
    %85 = vmatprep.subr.mxu0 0.0
    %86 = vmatpush1.msra.mxu0 0.0
    %87 = vmatprep.subr.mxu0 0.0
    %88 = vmatpush1.msra.mxu0 0.0
    %89 = vmatprep.subr.mxu0 0.0
    %90 = vmatpush1.msra.mxu0 %v34
    %91 = vmatprep.subr.mxu0 0.0
    %92 = vmatpush1.msra.mxu0 %v33
    %93 = vmatprep.subr.mxu0 0.0
    %94 = vmatpush1.msra.mxu0 %v32
    %95 = vmatprep.subr.mxu0 0.0
    %96 = vmatpush2.msra.mxu0 0.0
    %97 = vmatprep.subr.mxu0 0.0
    %98 = vmatpush2.msra.mxu0 0.0
    %99 = vmatprep.subr.mxu0 0.0
    %100 = vmatpush2.msra.mxu0 0.0
    %101 = vmatprep.subr.mxu0 0.0
    %102 = vmatpush2.msra.mxu0 0.0
    %103 = vmatprep.subr.mxu0 0.0
    %104 = vmatpush2.msra.mxu0 0.0
    %105 = vmatprep.subr.mxu0 0.0
    %106 = vmatpush2.msra.mxu0 0.0
    %107 = vmatprep.subr.mxu0 0.0
    %108 = vmatpush2.msra.mxu0 0.0
    %109 = vmatprep.subr.mxu0 0.0
    %110 = vmatpush2.msra.mxu0 0.0
    %111 = vmatprep.subr.mxu0 0.0
    %112 = vmatpush2.msra.mxu0 0.0
    %113 = vmatprep.subr.mxu0 0.0
    %114 = vmatpush2.msra.mxu0 0.0
    %115 = vmatprep.subr.mxu0 0.0
    %116 = vmatpush2.msra.mxu0 0.0
    %117 = vmatprep.subr.mxu0 0.0
    %118 = vmatpush2.msra.mxu0 0.0
    %119 = vmatprep.subr.mxu0 0.0
    %120 = vmatpush2.msra.mxu0 0.0
    %121 = vmatprep.subr.mxu0 0.0
    %122 = vmatpush2.msra.mxu0 0.0
    %123 = vmatprep.subr.mxu0 0.0
    %124 = vmatpush2.msra.mxu0 0.0
    %125 = vmatprep.subr.mxu0 0.0
    %126 = vmatpush2.msra.mxu0 0.0
    %127 = vmatprep.mubr.f32.mxu0 0.0
    %128 = vmatmul.mubr.f32.gmra.mxu0 %v55
    %v129 = vpop.f32.mrf.mxu0
    %v130 = vadd.f32 %v41, %v129
    %v131 = vpop.f32.mrf.mxu0
    %132 = vmatprep.mubr.f32.mxu0 0.0
    %133 = vmatmul.mubr.f32.gmra.mxu0 %v58
    %v134 = vpop.f32.mrf.mxu0
    %v135 = vadd.f32 %v46, %v134
    %v136 = vpop.f32.mrf.mxu0
    %137 = vmatprep.mubr.f32.mxu0 0.0
    %138 = vmatmul.mubr.f32.gmra.mxu0 %v61
    %v139 = vpop.f32.mrf.mxu0
    %v140 = vadd.f32 %v51, %v139
    %v141 = vpop.f32.mrf.mxu0
    %142 = vdwg.mxu0
    %143 = vst [vmem:[#allocation5] sm:$0xff] %v130
    %144 = vst [vmem:[#allocation5 + $0x8] sm:$0xff] %v135
    %145 = vst [vmem:[#allocation5 + $0x10] sm:$0xff] %v140
    // Predicated region
    $region18: #{tpu_custom_call.1} parent=1 // pred_check
      _
    $region19: #{tpu_custom_call.1} parent=1 // pred_check_branch
      %147 = sbr.rel (0) target = $region21
    $region20: #{tpu_custom_call.1} parent=1 // pred_region
      %s149 = ssub.s32 384, 384
      %150 = vsyncadd [#allocation4], %s149
      %s151 = sshll.u32 [#allocation5], 4
      %s152 = int_to_ptr.vmem [resolvable:$true] %s151
      %157 = dma.vmem_to_hbm [thread:$0]  %s152, 384, %s3, [#allocation4], 128, 128, 8
    $region21: #{tpu_custom_call.1} parent=1 // pred_fallthru
      _
    // Predicated region
    $region22: #{tpu_custom_call.1} parent=1 // pred_check
      _
    $region23: #{tpu_custom_call.1} parent=1 // pred_check_branch
      %159 = sbr.rel (0) target = $region25
    $region24: #{tpu_custom_call.1} parent=1 // pred_region
      %160 = dma.done [#allocation4], 384
    $region25: #{tpu_custom_call.1} parent=1 // pred_fallthru
      _
    %161 = vsyncpa [#allocation3], 1
    %162 = vsyncpa [#allocation4], 1

</llo_original>
